<compile_context>
chip_gen: v7x
topology: tpu7x:2x2x1
jax: 0.10.0
libtpu: 0.0.40
codegen_flags: <defaults>
</compile_context>

<pallas_src>
import jax
import jax.numpy as jnp
from jax.experimental import pallas as pl
from jax.experimental.pallas import tpu as pltpu


def _ceil_to(x, m):
    return ((x + m - 1) // m) * m


# --- main kernel: whole K (and normally whole E) in one block --------------
def _patch_embed_kernel(x_ref, w_ref, b_ref, o_ref):
    # x_ref: (tm, K) bf16 patch rows; w_ref: (K, tn) bf16; b_ref: (1, tn) f32.
    # Single MXU pass, fused bias, direct lane-dense store; no VMEM accumulator
    # (on v7x this lets the MRB do the accumulation).
    o_ref[...] = (
        jnp.dot(x_ref[...], w_ref[...], preferred_element_type=jnp.float32)
        + b_ref[...]
    ).astype(o_ref.dtype)


# --- fallback for very large K: K grid axis + resident f32 accumulator -----
def _patch_embed_kernel_ksplit(x_ref, w_ref, b_ref, o_ref, acc_ref):
    k = pl.program_id(2)
    part = jnp.dot(x_ref[...], w_ref[...], preferred_element_type=jnp.float32)

    @pl.when(k == 0)
    def _():
        acc_ref[...] = part            # init with first dot (saves a pass; v5e vst-friendly)

    @pl.when(k > 0)
    def _():
        acc_ref[...] += part

    @pl.when(k == pl.num_programs(2) - 1)
    def _():
        o_ref[...] = (acc_ref[...] + b_ref[...]).astype(o_ref.dtype)


_K_SINGLE_BLOCK_MAX = 4096   # every standard ViT config has C*P*P <= 3072
_E_SINGLE_BLOCK_MAX = 2048   # keep weight + f32 out tile comfortably in VMEM (incl. v7x 64 MiB)
_TM = 512                    # ~85% of HBM roofline at 512-wide tiles; fits v5e's 16 MiB default


def patch_embedding(x, weight, bias, patch_size):
    """ViT patch embedding.

    x: (B, C, H, W) NCHW. weight: (E, C, P, P). bias: (E,).
    Returns (B, (H//P)*(W//P), E), equal to
    Conv2d(stride=P, kernel=P) -> flatten(2) -> transpose(1, 2).
    """
    B, C, H, W = x.shape
    E = weight.shape[0]
    P = patch_size
    assert H % P == 0 and W % P == 0, "H and W must be divisible by patch_size"
    nH, nW = H // P, W // P
    N = nH * nW
    K = C * P * P
    M = B * N
    out_dtype = x.dtype

    # --- glue: NCHW -> (B*N, K) bf16 patch matrix, feature order (c, ph, pw) ---
    # TODO(synk): fold the patch extraction into the kernel's DMA (x BlockSpec of
    # (1, C, P, W) per (batch, patch_row) with the flatten done in-kernel) to
    # drop this extra HBM round trip of the dominant operand.
    patches = x.astype(jnp.bfloat16).reshape(B, C, nH, P, nW, P)
    patches = patches.transpose(0, 2, 4, 1, 3, 5).reshape(M, K)
    w_flat = weight.astype(jnp.bfloat16).reshape(E, K).T      # (K, E)
    b_flat = bias.astype(jnp.float32).reshape(1, E)           # (1, E)

    # Tile sizes.  Blocks either equal the full dim or are 8/128-aligned, so no
    # zero-padding copies of the patch matrix are needed.
    tm = _TM if M > _TM else M
    tn = E if E <= _E_SINGLE_BLOCK_MAX else 1024
    grid_m = pl.cdiv(M, tm)
    grid_n = pl.cdiv(E, tn)   # == 1 for all standard ViT configs -> x read once

    if K <= _K_SINGLE_BLOCK_MAX:
        out = pl.pallas_call(
            _patch_embed_kernel,
            out_shape=jax.ShapeDtypeStruct((M, E), out_dtype),
            grid_spec=pltpu.PrefetchScalarGridSpec(
                num_scalar_prefetch=0,
                grid=(grid_m, grid_n),
                in_specs=[
                    pl.BlockSpec((tm, K), lambda i, j: (i, 0)),
                    pl.BlockSpec((K, tn), lambda i, j: (0, j)),
                    pl.BlockSpec((1, tn), lambda i, j: (0, j)),
                ],
                out_specs=pl.BlockSpec((tm, tn), lambda i, j: (i, j)),
            ),
            compiler_params=pltpu.CompilerParams(
                dimension_semantics=("parallel", "parallel"),
            ),
        )(patches, w_flat, b_flat)
    else:
        # Rare fallback for very large K: K grid axis with zero-padded K so the
        # ragged tail contributes 0 to the reduction.
        tk = 2048
        Kp = _ceil_to(K, tk)
        patches = jnp.pad(patches, ((0, 0), (0, Kp - K)))
        w_flat = jnp.pad(w_flat, ((0, Kp - K), (0, 0)))
        out = pl.pallas_call(
            _patch_embed_kernel_ksplit,
            out_shape=jax.ShapeDtypeStruct((M, E), out_dtype),
            grid_spec=pltpu.PrefetchScalarGridSpec(
                num_scalar_prefetch=0,
                grid=(grid_m, grid_n, Kp // tk),
                in_specs=[
                    pl.BlockSpec((tm, tk), lambda i, j, k: (i, k)),
                    pl.BlockSpec((tk, tn), lambda i, j, k: (k, j)),
                    pl.BlockSpec((1, tn), lambda i, j, k: (0, j)),
                ],
                out_specs=pl.BlockSpec((tm, tn), lambda i, j, k: (i, j)),
                scratch_shapes=[pltpu.VMEM((tm, tn), jnp.float32)],
            ),
            compiler_params=pltpu.CompilerParams(
                dimension_semantics=("parallel", "parallel", "arbitrary"),
            ),
        )(patches, w_flat, b_flat)

    # (M, E) -> (B, N, E); pure metadata reshape, no copy, no padding to strip.
    return out.reshape(B, N, E)


if __name__ == "__main__":
    # Small, consistent shapes: in_channels=4, patch_size=4, emb_size=32,
    # image 16x16 -> 4x4 = 16 patches.
    B, C, H, W = 2, 4, 16, 16
    P, E = 4, 32

    key = jax.random.PRNGKey(0)
    kx, kw, kb = jax.random.split(key, 3)
    x = jax.random.normal(kx, (B, C, H, W), dtype=jnp.float32)
    weight = jax.random.normal(kw, (E, C, P, P), dtype=jnp.float32) * 0.02
    bias = jax.random.normal(kb, (E,), dtype=jnp.float32) * 0.02

    print('Before PatchEmbedding:', x.shape)
    out = patch_embedding(x, weight, bias, P)
    out = jax.block_until_ready(out)
    print('After PatchEmbedding:', out.shape)

    # Reference 1: identical bf16 operand quantization, f32 accumulation.
    x_q = x.astype(jnp.bfloat16).astype(jnp.float32)
    w_q = weight.astype(jnp.bfloat16).astype(jnp.float32)
    ref = jax.lax.conv_general_dilated(
        x_q, w_q, window_strides=(P, P), padding='VALID',
        dimension_numbers=('NCHW', 'OIHW', 'NCHW'))
    ref = ref + bias.reshape(1, E, 1, 1)
    ref = ref.reshape(B, E, -1).transpose(0, 2, 1)     # flatten(2).transpose(1,2)

    assert out.shape == (B, (H // P) * (W // P), E)
    assert jnp.allclose(out, ref, atol=1e-3, rtol=1e-3), \
        float(jnp.max(jnp.abs(out - ref)))

    # Reference 2: full f32 conv, loose tolerance (bf16 operand rounding).
    ref_f32 = jax.lax.conv_general_dilated(
        x, weight, window_strides=(P, P), padding='VALID',
        dimension_numbers=('NCHW', 'OIHW', 'NCHW'))
    ref_f32 = ref_f32 + bias.reshape(1, E, 1, 1)
    ref_f32 = ref_f32.reshape(B, E, -1).transpose(0, 2, 1)
    assert jnp.allclose(out, ref_f32, atol=5e-2, rtol=5e-2)

    print("KERNEL_OK")
</pallas_src>

<mosaic_0001>
module attributes {stable_mosaic.version = 11 : i64} {
  func.func @_patch_embed_kernel(%arg0: i32, %arg1: i32, %arg2: memref<32x64xbf16, #tpu.memory_space<vmem>>, %arg3: memref<64x32xbf16, #tpu.memory_space<vmem>>, %arg4: memref<1x32xf32, #tpu.memory_space<vmem>>, %arg5: memref<32x32xf32, #tpu.memory_space<vmem>>) attributes {dimension_semantics = [#tpu.dimension_semantics<parallel>, #tpu.dimension_semantics<parallel>], iteration_bounds = array<i64: 1, 1>, scalar_prefetch = 0 : i64, scratch_operands = 0 : i64, tpu.core_type = #tpu.core_type<tc>, window_params = [{transform_indices = @transform_0, window_bounds = array<i64: 32, 64>}, {transform_indices = @transform_1, window_bounds = array<i64: 64, 32>}, {transform_indices = @transform_2, window_bounds = array<i64: 1, 32>}, {transform_indices = @transform_3, window_bounds = array<i64: 32, 32>}]} {
    %c0 = arith.constant 0 : index
    %c0_0 = arith.constant 0 : index
    %0 = vector.load %arg2[%c0, %c0_0] : memref<32x64xbf16, #tpu.memory_space<vmem>>, vector<32x64xbf16>
    %c0_1 = arith.constant 0 : index
    %c0_2 = arith.constant 0 : index
    %1 = vector.load %arg3[%c0_1, %c0_2] : memref<64x32xbf16, #tpu.memory_space<vmem>>, vector<64x32xbf16>
    %cst = arith.constant dense<0.000000e+00> : vector<32x32xf32>
    %2 = tpu.matmul %0, %1, %cst {dimension_numbers = #tpu.dot_dimension_numbers<[1], [0], [0], [1], [0, 0, 1, 1], [], []>} : vector<32x64xbf16>, vector<64x32xbf16>, vector<32x32xf32> -> vector<32x32xf32>
    %c0_3 = arith.constant 0 : index
    %c0_4 = arith.constant 0 : index
    %3 = vector.load %arg4[%c0_3, %c0_4] : memref<1x32xf32, #tpu.memory_space<vmem>>, vector<1x32xf32>
    %4 = vector.broadcast %3 : vector<1x32xf32> to vector<32x32xf32>
    %5 = arith.addf %2, %4 : vector<32x32xf32>
    %c0_5 = arith.constant 0 : index
    %c0_6 = arith.constant 0 : index
    %6 = vector.load %arg5[%c0_5, %c0_6] : memref<32x32xf32, #tpu.memory_space<vmem>>, vector<32x32xf32>
    tpu.vector_store %arg5[%c0_5, %c0_6], %5 {strides = array<i32>} : memref<32x32xf32, #tpu.memory_space<vmem>>, vector<32x32xf32>,
    return
  }
  func.func @transform_0(%arg0: i32, %arg1: i32) -> (i32, i32) {
    %c0_i32 = arith.constant 0 : i32
    %c0_i32_0 = arith.constant 0 : i32
    return %arg0, %c0_i32 : i32, i32
  }
  func.func @transform_1(%arg0: i32, %arg1: i32) -> (i32, i32) {
    %c0_i32 = arith.constant 0 : i32
    %c0_i32_0 = arith.constant 0 : i32
    return %c0_i32, %arg1 : i32, i32
  }
  func.func @transform_2(%arg0: i32, %arg1: i32) -> (i32, i32) {
    %c0_i32 = arith.constant 0 : i32
    %c0_i32_0 = arith.constant 0 : i32
    return %c0_i32, %arg1 : i32, i32
  }
  func.func @transform_3(%arg0: i32, %arg1: i32) -> (i32, i32) {
    %c0_i32 = arith.constant 0 : i32
    return %arg0, %arg1 : i32, i32
  }
}

</mosaic_0001>

<llo_original>
// kernel: tpu_custom_call.1
$region0: #{tpu_custom_call.1}
  #allocation0 [shape = 'u32[]', space=smem, size = 0x4, offset = 0x4, fixed_abs, tag = 'smem constant byte address 0x4 - core index']
  #allocation1 [shape = 'u32[144,128]{1,0:T(1,128)}', space=vmem, size = 0x12000, scoped, tag = 'internal scratch']
  %s0 = inlined_call_operand.vmem [shape: bf16[32,64], index: 0, kind: input, shape index: {}]
  %s1 = inlined_call_operand.vmem [shape: bf16[64,32], index: 1, kind: input, shape index: {}]
  %s2 = inlined_call_operand.vmem [shape: f32[1,32], index: 2, kind: input, shape index: {}]
  %s3 = inlined_call_operand.hbm [shape: f32[32,32], index: 3, kind: output, shape index: {}]
  %s4 = sld [smem:[#allocation0]]
  $region22: #{tpu_custom_call.1} parent=0
    _
  %s6 = ssub.s32 1, %s4
  %s7 = scalar_select 0, %s6, %s4
  $region1: #{tpu_custom_call.1} parent=0
    #allocation2 [shape = 'u8[16384]{0}', space=vmem, size = 0x4000, scoped, tag = 'output window, operand 0, single buffered']
    #allocation3 [shape = 's32[1]{0}', space=sflag, size = 0x4, scoped, tag = 'scoped memory for tpu_custom_call.1']
    %8 = vsyncpa [#allocation3], 0
    // Predicated region
    $region2: #{tpu_custom_call.1} parent=1 // pred_check
      _
    $region3: #{tpu_custom_call.1} parent=1 // pred_check_branch
      %10 = sbr.rel (0) target = $region5
    $region4: #{tpu_custom_call.1} parent=1 // pred_region
      _
    $region5: #{tpu_custom_call.1} parent=1 // pred_fallthru
      _
    // Predicated region
    $region6: #{tpu_custom_call.1} parent=1 // pred_check
      _
    $region7: #{tpu_custom_call.1} parent=1 // pred_check_branch
      %12 = sbr.rel (0) target = $region9
    $region8: #{tpu_custom_call.1} parent=1 // pred_region
      _
    $region9: #{tpu_custom_call.1} parent=1 // pred_fallthru
      _
    // Predicated region
    $region10: #{tpu_custom_call.1} parent=1 // pred_check
      _
    $region11: #{tpu_custom_call.1} parent=1 // pred_check_branch
      %14 = sbr.rel (0) target = $region13
    $region12: #{tpu_custom_call.1} parent=1 // pred_region
      _
    $region13: #{tpu_custom_call.1} parent=1 // pred_fallthru
      _
    %v16 = vld [vmem:[%s0] sm:$0xf]
    %v17 = vld [vmem:[%s0 + $0x4] sm:$0xf]
    %v18 = vld [vmem:[%s0 + $0x8] sm:$0xf]
    %v19 = vld [vmem:[%s0 + $0xc] sm:$0xf]
    %v20 = vld [vmem:[%s1] sm:$0xf]
    %v21 = vld [vmem:[%s1 + $0x4] sm:$0xf]
    %v22 = vld [vmem:[%s1 + $0x8] sm:$0xf]
    %v23 = vld [vmem:[%s1 + $0xc] sm:$0xf]
    %v24 = vld [vmem:[%s1 + $0x10] sm:$0xf]
    %v25 = vld [vmem:[%s1 + $0x14] sm:$0xf]
    %v26 = vld [vmem:[%s1 + $0x18] sm:$0xf]
    %v27 = vld [vmem:[%s1 + $0x1c] sm:$0xf]
    %v28 = vld [vmem:[%s2] sm:$0x1]
    %v30 = vlaneseq
    %v31 = vshrl.u32 %v30, 7
    %v32 = vsub.s32 0, %v31
    %v33 = vrot.slane %v28, %v32
    %v39 = vunpack.c.l.b16 %v16
    %v40 = vunpack.c.l.b16 %v17
    %v41 = vunpack.c.l.b16 %v18
    %v42 = vunpack.c.l.b16 %v19
    %v43 = vpack.c.b16 %v40, %v39
    %v44 = vpack.c.b16 %v42, %v41
    %v53 = vunpack.c.l.b16 %v20
    %v54 = vunpack.c.l.b16 %v21
    %v55 = vunpack.c.l.b16 %v22
    %v56 = vunpack.c.l.b16 %v23
    %v57 = vunpack.c.l.b16 %v24
    %v58 = vunpack.c.l.b16 %v25
    %v59 = vunpack.c.l.b16 %v26
    %v60 = vunpack.c.l.b16 %v27
    %v61 = vpack.c.b16 %v54, %v53
    %v62 = vpack.c.b16 %v56, %v55
    %v63 = vpack.c.b16 %v58, %v57
    %v64 = vpack.c.b16 %v60, %v59
    %vm69 = vcmask 523264
    %v71 = vsel %vm69, %v43, 0
    %v74 = vsel %vm69, %v44, 0
    %76 = vmatprep.subr.bf16.mxu0 0
    %77 = vmatpush1.bf16.msra.mxu0 %v61
    %78 = vmatprep.subr.bf16.mxu0 0
    %79 = vmatpush1.bf16.msra.mxu0 %v62
    %80 = vmatprep.subr.bf16.mxu0 0
    %81 = vmatpush1.bf16.msra.mxu0 %v63
    %82 = vmatprep.subr.bf16.mxu0 0
    %83 = vmatpush1.bf16.msra.mxu0 %v64
    %84 = vmatprep.subr.bf16.mxu0 0
    %85 = vmatpush1.bf16.msra.mxu0 0
    %86 = vmatprep.subr.bf16.mxu0 0
    %87 = vmatpush1.bf16.msra.mxu0 0
    %88 = vmatprep.subr.bf16.mxu0 0
    %89 = vmatpush1.bf16.msra.mxu0 0
    %90 = vmatprep.subr.bf16.mxu0 0
    %91 = vmatpush1.bf16.msra.mxu0 0
    %92 = vmatprep.subr.bf16.mxu0 0
    %93 = vmatpush1.bf16.msra.mxu0 0
    %94 = vmatprep.subr.bf16.mxu0 0
    %95 = vmatpush1.bf16.msra.mxu0 0
    %96 = vmatprep.subr.bf16.mxu0 0
    %97 = vmatpush1.bf16.msra.mxu0 0
    %98 = vmatprep.subr.bf16.mxu0 0
    %99 = vmatpush1.bf16.msra.mxu0 0
    %100 = vmatprep.subr.bf16.mxu0 0
    %101 = vmatpush1.bf16.msra.mxu0 0
    %102 = vmatprep.subr.bf16.mxu0 0
    %103 = vmatpush1.bf16.msra.mxu0 0
    %104 = vmatprep.subr.bf16.mxu0 0
    %105 = vmatpush1.bf16.msra.mxu0 0
    %106 = vmatprep.subr.bf16.mxu0 0
    %107 = vmatpush1.bf16.msra.mxu0 0
    %108 = vmatprep.mubr.bf16.mxu0 0
    %109 = vmatmul.mubr.bf16.gmra.mrb[0].mxu0 %v71
    %v110 = vpop.f32.mrb[0].mxu0
    %v111 = vadd.f32 %v33, %v110
    %v112 = vpop.f32.mrb[0].mxu0
    %v113 = vpop.f32.mrb[0].mxu0
    %v114 = vadd.f32 %v33, %v113
    %v115 = vpop.f32.mrb[0].mxu0
    %116 = vmatprep.mubr.bf16.mxu0 0
    %117 = vmatmul.mubr.bf16.gmra.mrb[0].mxu0 %v74
    %v118 = vpop.f32.mrb[0].mxu0
    %v119 = vadd.f32 %v33, %v118
    %v120 = vpop.f32.mrb[0].mxu0
    %v121 = vpop.f32.mrb[0].mxu0
    %v122 = vadd.f32 %v33, %v121
    %v123 = vpop.f32.mrb[0].mxu0
    %124 = vdwg.mxu0
    %vm125 = vcmask 261120
    %126 = vst.msk [vmem:[#allocation2] sm:$0xff] %vm125, %v111
    %127 = vst.msk [vmem:[#allocation2 + $0x8] sm:$0xff] %vm125, %v114
    %128 = vst.msk [vmem:[#allocation2 + $0x10] sm:$0xff] %vm125, %v119
    %129 = vst.msk [vmem:[#allocation2 + $0x18] sm:$0xff] %vm125, %v122
    // Predicated region
    $region14: #{tpu_custom_call.1} parent=1 // pred_check
      _
    $region15: #{tpu_custom_call.1} parent=1 // pred_check_branch
      %131 = sbr.rel (0) target = $region17
    $region16: #{tpu_custom_call.1} parent=1 // pred_region
      %s133 = ssub.s32 512, 512
      %134 = vsyncadd [#allocation3], %s133
      %s135 = sshll.u32 [#allocation2], 4
      %s136 = int_to_ptr.vmem [resolvable:$true] %s135
      %141 = dma.vmem_to_hbm [thread:$0]  %s136, 512, %s3, [#allocation3], 128, 128, 8
    $region17: #{tpu_custom_call.1} parent=1 // pred_fallthru
      _
    // Predicated region
    $region18: #{tpu_custom_call.1} parent=1 // pred_check
      _
    $region19: #{tpu_custom_call.1} parent=1 // pred_check_branch
      %143 = sbr.rel (0) target = $region21
    $region20: #{tpu_custom_call.1} parent=1 // pred_region
      %144 = dma.done [#allocation3], 512
    $region21: #{tpu_custom_call.1} parent=1 // pred_fallthru
      _
    %145 = vsyncpa [#allocation3], 1

</llo_original>
